<compile_context>
chip_gen: v6e
topology: v6e:2x2x1
jax: 0.10.0
libtpu: 0.0.40
codegen_flags: <defaults>
</compile_context>

<pallas_src>
import numpy as np
import jax
import jax.numpy as jnp
from jax.experimental import pallas as pl
from jax.experimental.pallas import tpu as pltpu

# ---- Hyper-parameters implied by the PyTorch module -------------------------
C_IN, C1, C2 = 4, 10, 1          # conv channels
K1, K2 = 12, 3                   # conv kernel sizes
L = 64                           # x.view(-1, 64) after a 1-channel conv => seq length 64
H1, H2 = 10, 1                   # fc1/fc2 output dims

# PyTorch padding='same' (stride=1): total = k-1, left = total//2, right = total-left
PAD1_L = (K1 - 1) // 2           # 5
PAD2_L = (K2 - 1) // 2           # 1

TILE_N = 512                     # batch tile (rows per grid step); sweep 512-2048


# ---- Pallas kernel -----------------------------------------------------------
def vectornet_kernel(x_ref, w1b_ref, b1_ref, w2b_ref, b2_ref,
                     wfc1_ref, bfc1_ref, wfc2_ref, bfc2_ref, out_ref):
    # x tile: (TN, 256) bf16 ; weights resident in VMEM across grid steps.
    x = x_ref[...]

    # conv1 ('same', k=12, padding folded into band) -> (TN, 640), bias+ReLU in f32
    z1 = jnp.dot(x, w1b_ref[...], preferred_element_type=jnp.float32) + b1_ref[...]
    z1 = jnp.maximum(z1, 0.0)

    # conv2 ('same', k=3) as banded matmul -> (TN, 64)
    z2 = jnp.dot(z1.astype(jnp.bfloat16), w2b_ref[...],
                 preferred_element_type=jnp.float32) + b2_ref[...]
    z2 = jnp.maximum(z2, 0.0)

    # FC tail in transposed orientation so the final store is lane-dense (1, TN).
    # fc1: z3^T = relu(Wfc1 (10,64) @ z2^T (64,TN) + bfc1 (10,1))
    z3t = jnp.dot(wfc1_ref[...], z2.T,
                  preferred_element_type=jnp.float32) + bfc1_ref[...]
    z3t = jnp.maximum(z3t, 0.0)                                   # (10, TN)

    # fc2 (10 -> 1) on VPU/XLU: broadcast multiply + sublane reduce (MXU not needed)
    out_ref[...] = (jnp.sum(z3t * wfc2_ref[...], axis=0, keepdims=True)
                    + bfc2_ref[...])                              # (1, TN)


# ---- Glue: band-matrix construction (parameter setup, not hot path) ----------
def conv1_band(w1):
    """w1: (C1, C_IN, K1). Band matrix B with 'same' padding folded in, so that
    x_flat (N, C_IN*L) @ B == conv1 output flat (N, C1*L)."""
    W = np.zeros((C_IN * L, C1 * L), np.float32)
    for co in range(C1):
        for ci in range(C_IN):
            for l in range(L):
                for k in range(K1):
                    s = l + k - PAD1_L          # source index in the unpadded input
                    if 0 <= s < L:
                        W[ci * L + s, co * L + l] = w1[co, ci, k]
    return W


def conv2_band(w2):
    """w2: (1, C1, K2). Band matrix B s.t. (relu(conv1) flat) @ B == conv2 output flat."""
    W = np.zeros((C1 * L, L), np.float32)
    for ci in range(C1):
        for l in range(L):
            for k in range(K2):
                s = l + k - PAD2_L
                if 0 <= s < L:
                    W[ci * L + s, l] = w2[0, ci, k]
    return W


def init_raw_params(key):
    ks = jax.random.split(key, 8)
    w1 = jax.random.normal(ks[0], (C1, C_IN, K1), jnp.float32) * 0.1
    b1 = jax.random.normal(ks[1], (C1,), jnp.float32) * 0.1
    w2 = jax.random.normal(ks[2], (C2, C1, K2), jnp.float32) * 0.1
    b2 = jax.random.normal(ks[3], (C2,), jnp.float32) * 0.1
    wfc1 = jax.random.normal(ks[4], (H1, L), jnp.float32) * 0.1    # Linear(64,10).weight
    bfc1 = jax.random.normal(ks[5], (H1,), jnp.float32) * 0.1
    wfc2 = jax.random.normal(ks[6], (H2, H1), jnp.float32) * 0.1   # Linear(10,1).weight
    bfc2 = jax.random.normal(ks[7], (H2,), jnp.float32) * 0.1
    return (w1, b1, w2, b2, wfc1, bfc1, wfc2, bfc2)


def pack_params(raw):
    w1, b1, w2, b2, wfc1, bfc1, wfc2, bfc2 = (np.asarray(p, np.float32) for p in raw)
    return dict(
        w1b=jnp.asarray(conv1_band(w1), jnp.bfloat16),         # (256, 640) bf16
        b1f=jnp.asarray(np.repeat(b1, L)[None, :]),            # (1, 640)  f32
        w2b=jnp.asarray(conv2_band(w2), jnp.bfloat16),          # (640, 64) bf16
        b2f=jnp.asarray(np.full((1, L), b2[0], np.float32)),   # (1, 64)   f32
        wfc1=jnp.asarray(wfc1),                                 # (10, 64)  f32 (tiny)
        bfc1=jnp.asarray(bfc1[:, None]),                        # (10, 1)
        wfc2=jnp.asarray(wfc2.T),                               # (10, 1)
        bfc2=jnp.asarray(bfc2[None, :]),                        # (1, 1)
    )


# ---- Wrapper calling the Pallas kernel ---------------------------------------
def vector_net_forward(x, params, tile_n=TILE_N):
    N = x.shape[0]
    # NCL -> (N, C_IN*L): contiguous reshape (no copy). bf16 stream halves input
    # HBM bytes into the kernel (in a real pipeline the producer emits bf16).
    x_flat = x.reshape(N, C_IN * L).astype(jnp.bfloat16)

    tn = tile_n if N >= tile_n else N          # small batches: single exact block
    grid_n = pl.cdiv(N, tn)                    # partial last tile is masked by Pallas

    flops = 2 * N * (C_IN * L * C1 * L + C1 * L * L + L * H1 + H1)
    bytes_accessed = (N * C_IN * L * 2 + N * 4                 # input stream + output
                      + (C_IN * L * C1 * L + C1 * L * L) * 2   # bf16 band matrices
                      + (C1 * L + L + H1 * L + 2 * H1 + 1) * 4)

    out_row = pl.pallas_call(
        vectornet_kernel,
        out_shape=jax.ShapeDtypeStruct((1, N), jnp.float32),
        grid=(grid_n,),
        in_specs=[
            pl.BlockSpec((tn, C_IN * L), lambda i: (i, 0)),        # streamed x tile
            pl.BlockSpec((C_IN * L, C1 * L), lambda i: (0, 0)),    # w1b  (resident)
            pl.BlockSpec((1, C1 * L), lambda i: (0, 0)),           # b1
            pl.BlockSpec((C1 * L, L), lambda i: (0, 0)),           # w2b
            pl.BlockSpec((1, L), lambda i: (0, 0)),                # b2
            pl.BlockSpec((H1, L), lambda i: (0, 0)),               # wfc1
            pl.BlockSpec((H1, 1), lambda i: (0, 0)),               # bfc1
            pl.BlockSpec((H1, 1), lambda i: (0, 0)),               # wfc2 (column)
            pl.BlockSpec((1, 1), lambda i: (0, 0)),                # bfc2
        ],
        out_specs=pl.BlockSpec((1, tn), lambda i: (0, i)),         # lane-dense slab
        compiler_params=pltpu.CompilerParams(
            dimension_semantics=("parallel",)),
        cost_estimate=pl.CostEstimate(flops=flops, transcendentals=0,
                                      bytes_accessed=bytes_accessed),
    )(x_flat, params["w1b"], params["b1f"], params["w2b"], params["b2f"],
      params["wfc1"], params["bfc1"], params["wfc2"], params["bfc2"])

    return out_row.reshape(N, 1)               # match PyTorch (N, 1) output


# ---- Pure-JAX reference (PyTorch semantics, f32) for verification -------------
def ref_forward(x, raw):
    w1, b1, w2, b2, wfc1, bfc1, wfc2, bfc2 = raw
    # PyTorch 'same' for even k: left = (k-1)//2, right = (k-1) - left
    xp = jnp.pad(x, ((0, 0), (0, 0), (PAD1_L, (K1 - 1) - PAD1_L)))
    y1 = b1[None, :, None] + sum(
        jnp.einsum('oc,ncl->nol', w1[:, :, k], xp[:, :, k:k + L]) for k in range(K1))
    y1 = jax.nn.relu(y1)
    y1p = jnp.pad(y1, ((0, 0), (0, 0), (PAD2_L, (K2 - 1) - PAD2_L)))
    y2 = b2[None, :, None] + sum(
        jnp.einsum('oc,ncl->nol', w2[:, :, k], y1p[:, :, k:k + L]) for k in range(K2))
    y2 = jax.nn.relu(y2)
    z = y2.reshape(-1, L)
    z = jax.nn.relu(z @ wfc1.T + bfc1)
    return z @ wfc2.T + bfc2


if __name__ == "__main__":
    key = jax.random.PRNGKey(0)
    k_param, k_x, k_x2 = jax.random.split(key, 3)

    raw = init_raw_params(k_param)
    params = pack_params(raw)

    fwd = jax.jit(vector_net_forward)

    # Small demo shape implied by the module: (batch=2, channels=4, length=64).
    x = jax.random.normal(k_x, (2, C_IN, L), jnp.float32)
    out = jax.block_until_ready(fwd(x, params))
    ref = jax.block_until_ready(ref_forward(x, raw))
    np.testing.assert_allclose(np.asarray(out), np.asarray(ref), rtol=2e-2, atol=1e-2)

    # Larger batch to exercise the tiled grid (2 tiles, partial last tile).
    x2 = jax.random.normal(k_x2, (1000, C_IN, L), jnp.float32)
    out2 = jax.block_until_ready(fwd(x2, params))
    ref2 = jax.block_until_ready(ref_forward(x2, raw))
    np.testing.assert_allclose(np.asarray(out2), np.asarray(ref2), rtol=2e-2, atol=1e-2)

    print("KERNEL_OK")
</pallas_src>

<mosaic_0001>
module attributes {stable_mosaic.version = 11 : i64} {
  func.func @vectornet_kernel(%arg0: i32, %arg1: memref<2x256xbf16, #tpu.memory_space<vmem>>, %arg2: memref<256x640xbf16, #tpu.memory_space<vmem>>, %arg3: memref<1x640xf32, #tpu.memory_space<vmem>>, %arg4: memref<640x64xbf16, #tpu.memory_space<vmem>>, %arg5: memref<1x64xf32, #tpu.memory_space<vmem>>, %arg6: memref<10x64xf32, #tpu.memory_space<vmem>>, %arg7: memref<10x1xf32, #tpu.memory_space<vmem>>, %arg8: memref<10x1xf32, #tpu.memory_space<vmem>>, %arg9: memref<1x1xf32, #tpu.memory_space<vmem>>, %arg10: memref<1x2xf32, #tpu.memory_space<vmem>>) attributes {dimension_semantics = [#tpu.dimension_semantics<parallel>], iteration_bounds = array<i64: 1>, scalar_prefetch = 0 : i64, scratch_operands = 0 : i64, tpu.core_type = #tpu.core_type<tc>, window_params = [{transform_indices = @transform_0, window_bounds = array<i64: 2, 256>}, {pipeline_mode = #tpu.pipeline_mode<synchronous>, transform_indices = @transform_1, window_bounds = array<i64: 256, 640>}, {pipeline_mode = #tpu.pipeline_mode<synchronous>, transform_indices = @transform_2, window_bounds = array<i64: 1, 640>}, {pipeline_mode = #tpu.pipeline_mode<synchronous>, transform_indices = @transform_3, window_bounds = array<i64: 640, 64>}, {pipeline_mode = #tpu.pipeline_mode<synchronous>, transform_indices = @transform_4, window_bounds = array<i64: 1, 64>}, {pipeline_mode = #tpu.pipeline_mode<synchronous>, transform_indices = @transform_5, window_bounds = array<i64: 10, 64>}, {pipeline_mode = #tpu.pipeline_mode<synchronous>, transform_indices = @transform_6, window_bounds = array<i64: 10, 1>}, {pipeline_mode = #tpu.pipeline_mode<synchronous>, transform_indices = @transform_7, window_bounds = array<i64: 10, 1>}, {pipeline_mode = #tpu.pipeline_mode<synchronous>, transform_indices = @transform_8, window_bounds = array<i64: 1, 1>}, {transform_indices = @transform_9, window_bounds = array<i64: 1, 2>}]} {
    %c0 = arith.constant 0 : index
    %c0_0 = arith.constant 0 : index
    %0 = vector.load %arg1[%c0, %c0_0] : memref<2x256xbf16, #tpu.memory_space<vmem>>, vector<2x256xbf16>
    %c0_1 = arith.constant 0 : index
    %c0_2 = arith.constant 0 : index
    %1 = vector.load %arg2[%c0_1, %c0_2] : memref<256x640xbf16, #tpu.memory_space<vmem>>, vector<256x640xbf16>
    %cst = arith.constant dense<0.000000e+00> : vector<2x640xf32>
    %2 = tpu.matmul %0, %1, %cst {dimension_numbers = #tpu.dot_dimension_numbers<[1], [0], [0], [1], [0, 0, 1, 1], [], []>} : vector<2x256xbf16>, vector<256x640xbf16>, vector<2x640xf32> -> vector<2x640xf32>
    %c0_3 = arith.constant 0 : index
    %c0_4 = arith.constant 0 : index
    %3 = vector.load %arg3[%c0_3, %c0_4] : memref<1x640xf32, #tpu.memory_space<vmem>>, vector<1x640xf32>
    %4 = vector.broadcast %3 : vector<1x640xf32> to vector<2x640xf32>
    %5 = arith.addf %2, %4 : vector<2x640xf32>
    %cst_5 = arith.constant 0.000000e+00 : f32
    %6 = vector.broadcast %cst_5 : f32 to vector<2x640xf32>
    %7 = arith.maximumf %5, %6 : vector<2x640xf32>
    %8 = arith.truncf %7 : vector<2x640xf32> to vector<2x640xbf16>
    %c0_6 = arith.constant 0 : index
    %c0_7 = arith.constant 0 : index
    %9 = vector.load %arg4[%c0_6, %c0_7] : memref<640x64xbf16, #tpu.memory_space<vmem>>, vector<640x64xbf16>
    %cst_8 = arith.constant dense<0.000000e+00> : vector<2x64xf32>
    %10 = tpu.matmul %8, %9, %cst_8 {dimension_numbers = #tpu.dot_dimension_numbers<[1], [0], [0], [1], [0, 0, 1, 1], [], []>} : vector<2x640xbf16>, vector<640x64xbf16>, vector<2x64xf32> -> vector<2x64xf32>
    %c0_9 = arith.constant 0 : index
    %c0_10 = arith.constant 0 : index
    %11 = vector.load %arg5[%c0_9, %c0_10] : memref<1x64xf32, #tpu.memory_space<vmem>>, vector<1x64xf32>
    %12 = vector.broadcast %11 : vector<1x64xf32> to vector<2x64xf32>
    %13 = arith.addf %10, %12 : vector<2x64xf32>
    %cst_11 = arith.constant 0.000000e+00 : f32
    %14 = vector.broadcast %cst_11 : f32 to vector<2x64xf32>
    %15 = arith.maximumf %13, %14 : vector<2x64xf32>
    %c0_12 = arith.constant 0 : index
    %c0_13 = arith.constant 0 : index
    %16 = vector.load %arg6[%c0_12, %c0_13] : memref<10x64xf32, #tpu.memory_space<vmem>>, vector<10x64xf32>
    %17 = tpu.transpose %15, [1, 0] : vector<2x64xf32> -> vector<64x2xf32>
    %cst_14 = arith.constant dense<0.000000e+00> : vector<10x2xf32>
    %18 = tpu.matmul %16, %17, %cst_14 {dimension_numbers = #tpu.dot_dimension_numbers<[1], [0], [0], [1], [0, 0, 1, 1], [], []>} : vector<10x64xf32>, vector<64x2xf32>, vector<10x2xf32> -> vector<10x2xf32>
    %c0_15 = arith.constant 0 : index
    %c0_16 = arith.constant 0 : index
    %19 = vector.load %arg7[%c0_15, %c0_16] : memref<10x1xf32, #tpu.memory_space<vmem>>, vector<10x1xf32>
    %20 = vector.broadcast %19 : vector<10x1xf32> to vector<10x2xf32>
    %21 = arith.addf %18, %20 : vector<10x2xf32>
    %cst_17 = arith.constant 0.000000e+00 : f32
    %22 = vector.broadcast %cst_17 : f32 to vector<10x2xf32>
    %23 = arith.maximumf %21, %22 : vector<10x2xf32>
    %c0_18 = arith.constant 0 : index
    %c0_19 = arith.constant 0 : index
    %24 = vector.load %arg8[%c0_18, %c0_19] : memref<10x1xf32, #tpu.memory_space<vmem>>, vector<10x1xf32>
    %25 = vector.broadcast %24 : vector<10x1xf32> to vector<10x2xf32>
    %26 = arith.mulf %23, %25 : vector<10x2xf32>
    %cst_20 = arith.constant dense<0.000000e+00> : vector<2xf32>
    %27 = vector.multi_reduction <add>, %26, %cst_20 [0] : vector<10x2xf32> to vector<2xf32>
    %28 = vector.shape_cast %27 : vector<2xf32> to vector<1x2xf32>
    %c0_21 = arith.constant 0 : index
    %c0_22 = arith.constant 0 : index
    %29 = vector.load %arg9[%c0_21, %c0_22] : memref<1x1xf32, #tpu.memory_space<vmem>>, vector<1x1xf32>
    %30 = vector.broadcast %29 : vector<1x1xf32> to vector<1x2xf32>
    %31 = arith.addf %28, %30 : vector<1x2xf32>
    %c0_23 = arith.constant 0 : index
    %c0_24 = arith.constant 0 : index
    %32 = vector.load %arg10[%c0_23, %c0_24] : memref<1x2xf32, #tpu.memory_space<vmem>>, vector<1x2xf32>
    tpu.vector_store %arg10[%c0_23, %c0_24], %31 {strides = array<i32>} : memref<1x2xf32, #tpu.memory_space<vmem>>, vector<1x2xf32>,
    return
  }
  func.func @transform_0(%arg0: i32) -> (i32, i32) {
    %c0_i32 = arith.constant 0 : i32
    %c0_i32_0 = arith.constant 0 : i32
    return %arg0, %c0_i32 : i32, i32
  }
  func.func @transform_1(%arg0: i32) -> (i32, i32) {
    %c0_i32 = arith.constant 0 : i32
    %c0_i32_0 = arith.constant 0 : i32
    %c0_i32_1 = arith.constant 0 : i32
    return %c0_i32, %c0_i32_0 : i32, i32
  }
  func.func @transform_2(%arg0: i32) -> (i32, i32) {
    %c0_i32 = arith.constant 0 : i32
    %c0_i32_0 = arith.constant 0 : i32
    %c0_i32_1 = arith.constant 0 : i32
    return %c0_i32, %c0_i32_0 : i32, i32
  }
  func.func @transform_3(%arg0: i32) -> (i32, i32) {
    %c0_i32 = arith.constant 0 : i32
    %c0_i32_0 = arith.constant 0 : i32
    %c0_i32_1 = arith.constant 0 : i32
    return %c0_i32, %c0_i32_0 : i32, i32
  }
  func.func @transform_4(%arg0: i32) -> (i32, i32) {
    %c0_i32 = arith.constant 0 : i32
    %c0_i32_0 = arith.constant 0 : i32
    %c0_i32_1 = arith.constant 0 : i32
    return %c0_i32, %c0_i32_0 : i32, i32
  }
  func.func @transform_5(%arg0: i32) -> (i32, i32) {
    %c0_i32 = arith.constant 0 : i32
    %c0_i32_0 = arith.constant 0 : i32
    %c0_i32_1 = arith.constant 0 : i32
    return %c0_i32, %c0_i32_0 : i32, i32
  }
  func.func @transform_6(%arg0: i32) -> (i32, i32) {
    %c0_i32 = arith.constant 0 : i32
    %c0_i32_0 = arith.constant 0 : i32
    %c0_i32_1 = arith.constant 0 : i32
    return %c0_i32, %c0_i32_0 : i32, i32
  }
  func.func @transform_7(%arg0: i32) -> (i32, i32) {
    %c0_i32 = arith.constant 0 : i32
    %c0_i32_0 = arith.constant 0 : i32
    %c0_i32_1 = arith.constant 0 : i32
    return %c0_i32, %c0_i32_0 : i32, i32
  }
  func.func @transform_8(%arg0: i32) -> (i32, i32) {
    %c0_i32 = arith.constant 0 : i32
    %c0_i32_0 = arith.constant 0 : i32
    %c0_i32_1 = arith.constant 0 : i32
    return %c0_i32, %c0_i32_0 : i32, i32
  }
  func.func @transform_9(%arg0: i32) -> (i32, i32) {
    %c0_i32 = arith.constant 0 : i32
    %c0_i32_0 = arith.constant 0 : i32
    return %c0_i32, %arg0 : i32, i32
  }
}

</mosaic_0001>

<llo_original>
// kernel: vector_net_forward.1
$region0: #{vector_net_forward.1}
  #allocation0 [shape = 'u32[]', space=smem, size = 0x4, offset = 0x4, fixed_abs, tag = 'smem constant byte address 0x4 - core index']
  #allocation1 [shape = 'u32[144,128]{1,0:T(1,128)}', space=vmem, size = 0x12000, scoped, tag = 'internal scratch']
  #allocation2 [shape = 'f32[1,1]{1,0:T(1,128)S(1)}', space=vmem, size = 0x200, scoped, tag = 'scoped memory for vector_net_forward.1']
  %s0 = inlined_call_operand.vmem [shape: bf16[2,256], index: 0, kind: input, shape index: {}]
  %s1 = inlined_call_operand.hbm [shape: bf16[256,640], index: 1, kind: input, shape index: {}]
  %s2 = inlined_call_operand.vmem [shape: f32[1,640], index: 2, kind: input, shape index: {}]
  %s3 = inlined_call_operand.vmem [shape: bf16[640,64], index: 3, kind: input, shape index: {}]
  %s4 = inlined_call_operand.vmem [shape: f32[1,64], index: 4, kind: input, shape index: {}]
  %s5 = inlined_call_operand.vmem [shape: f32[10,64], index: 5, kind: input, shape index: {}]
  %s6 = inlined_call_operand.vmem [shape: f32[10,1], index: 6, kind: input, shape index: {}]
  %s7 = inlined_call_operand.vmem [shape: f32[10,1], index: 7, kind: input, shape index: {}]
  %s8 = inlined_call_operand.<no memory space> [shape: f32[1,1], index: 8, kind: input, shape index: {}]
  %s9 = inlined_call_operand.hbm [shape: f32[1,2], index: 9, kind: output, shape index: {}]
  %s10 = sld [smem:[#allocation0]]
  $region50: #{vector_net_forward.1} parent=0
    _
  %s12 = ssub.s32 1, %s10
  %s13 = scalar_select 0, %s12, %s10
  %v14 = vstv %s8
  %15 = vst [vmem:[#allocation2] sm:$0x1] %v14
  $region1: #{vector_net_forward.1} parent=0
    #allocation3 [shape = 'u8[327680]{0}', space=vmem, size = 0x50000, scoped, tag = 'input window, operand 1, single buffered']
    #allocation4 [shape = 's32[1]{0}', space=sflag, size = 0x4, scoped, tag = 'scoped memory for vector_net_forward.1']
    #allocation5 [shape = 's32[1]{0}', space=sflag, size = 0x4, scoped, tag = 'scoped memory for vector_net_forward.1']
    #allocation6 [shape = 'u8[512]{0}', space=vmem, size = 0x400, scoped, tag = 'output window, operand 0, single buffered']
    %16 = vsyncpa [#allocation4], 0
    %17 = vsyncpa [#allocation5], 0
    // Predicated region
    $region2: #{vector_net_forward.1} parent=1 // pred_check
      _
    $region3: #{vector_net_forward.1} parent=1 // pred_check_branch
      %19 = sbr.rel (0) target = $region5
    $region4: #{vector_net_forward.1} parent=1 // pred_region
      _
    $region5: #{vector_net_forward.1} parent=1 // pred_fallthru
      _
    // Predicated region
    $region6: #{vector_net_forward.1} parent=1 // pred_check
      _
    $region7: #{vector_net_forward.1} parent=1 // pred_check_branch
      %21 = sbr.rel (0) target = $region9
    $region8: #{vector_net_forward.1} parent=1 // pred_region
      %s23 = ssub.s32 10240, 10240
      %24 = vsyncadd [#allocation4], %s23
      %s25 = sshll.u32 [#allocation3], 4
      %s26 = int_to_ptr.vmem [resolvable:$true] %s25
      %31 = dma.hbm_to_vmem [thread:$0]  %s1, 10240, %s26, [#allocation4], 320, 320, 20
    $region9: #{vector_net_forward.1} parent=1 // pred_fallthru
      _
    // Predicated region
    $region10: #{vector_net_forward.1} parent=1 // pred_check
      _
    $region11: #{vector_net_forward.1} parent=1 // pred_check_branch
      %33 = sbr.rel (0) target = $region13
    $region12: #{vector_net_forward.1} parent=1 // pred_region
      _
    $region13: #{vector_net_forward.1} parent=1 // pred_fallthru
      _
    // Predicated region
    $region14: #{vector_net_forward.1} parent=1 // pred_check
      _
    $region15: #{vector_net_forward.1} parent=1 // pred_check_branch
      %35 = sbr.rel (0) target = $region17
    $region16: #{vector_net_forward.1} parent=1 // pred_region
      _
    $region17: #{vector_net_forward.1} parent=1 // pred_fallthru
      _
    // Predicated region
    $region18: #{vector_net_forward.1} parent=1 // pred_check
      _
    $region19: #{vector_net_forward.1} parent=1 // pred_check_branch
      %37 = sbr.rel (0) target = $region21
    $region20: #{vector_net_forward.1} parent=1 // pred_region
      _
    $region21: #{vector_net_forward.1} parent=1 // pred_fallthru
      _
    // Predicated region
    $region22: #{vector_net_forward.1} parent=1 // pred_check
      _
    $region23: #{vector_net_forward.1} parent=1 // pred_check_branch
      %39 = sbr.rel (0) target = $region25
    $region24: #{vector_net_forward.1} parent=1 // pred_region
      _
    $region25: #{vector_net_forward.1} parent=1 // pred_fallthru
      _
    // Predicated region
    $region26: #{vector_net_forward.1} parent=1 // pred_check
      _
    $region27: #{vector_net_forward.1} parent=1 // pred_check_branch
      %41 = sbr.rel (0) target = $region29
    $region28: #{vector_net_forward.1} parent=1 // pred_region
      _
    $region29: #{vector_net_forward.1} parent=1 // pred_fallthru
      _
    // Predicated region
    $region30: #{vector_net_forward.1} parent=1 // pred_check
      _
    $region31: #{vector_net_forward.1} parent=1 // pred_check_branch
      %43 = sbr.rel (0) target = $region33
    $region32: #{vector_net_forward.1} parent=1 // pred_region
      _
    $region33: #{vector_net_forward.1} parent=1 // pred_fallthru
      _
    // Predicated region
    $region34: #{vector_net_forward.1} parent=1 // pred_check
      _
    $region35: #{vector_net_forward.1} parent=1 // pred_check_branch
      %45 = sbr.rel (0) target = $region37
    $region36: #{vector_net_forward.1} parent=1 // pred_region
      _
    $region37: #{vector_net_forward.1} parent=1 // pred_fallthru
      _
    // Predicated region
    $region38: #{vector_net_forward.1} parent=1 // pred_check
      _
    $region39: #{vector_net_forward.1} parent=1 // pred_check_branch
      %47 = sbr.rel (0) target = $region41
    $region40: #{vector_net_forward.1} parent=1 // pred_region
      %48 = dma.done [#allocation4], 10240
    $region41: #{vector_net_forward.1} parent=1 // pred_fallthru
      _
    %v50 = vld [vmem:[%s0] sm:$0x3]
    %v51 = vld [vmem:[#allocation3] sm:$0xff]
    %v52 = vld [vmem:[#allocation3 + $0x8] sm:$0xff]
    %v53 = vld [vmem:[#allocation3 + $0x10] sm:$0xf]
    %v54 = vld [vmem:[#allocation3 + $0x14] sm:$0xff]
    %v55 = vld [vmem:[#allocation3 + $0x1c] sm:$0xff]
    %v56 = vld [vmem:[#allocation3 + $0x24] sm:$0xf]
    %v57 = vld [vmem:[#allocation3 + $0x28] sm:$0xff]
    %v58 = vld [vmem:[#allocation3 + $0x30] sm:$0xff]
    %v59 = vld [vmem:[#allocation3 + $0x38] sm:$0xf]
    %v60 = vld [vmem:[#allocation3 + $0x3c] sm:$0xff]
    %v61 = vld [vmem:[#allocation3 + $0x44] sm:$0xff]
    %v62 = vld [vmem:[#allocation3 + $0x4c] sm:$0xf]
    %v63 = vld [vmem:[#allocation3 + $0x50] sm:$0xff]
    %v64 = vld [vmem:[#allocation3 + $0x58] sm:$0xff]
    %v65 = vld [vmem:[#allocation3 + $0x60] sm:$0xf]
    %v66 = vld [vmem:[#allocation3 + $0x64] sm:$0xff]
    %v67 = vld [vmem:[#allocation3 + $0x6c] sm:$0xff]
    %v68 = vld [vmem:[#allocation3 + $0x74] sm:$0xf]
    %v69 = vld [vmem:[#allocation3 + $0x78] sm:$0xff]
    %v70 = vld [vmem:[#allocation3 + $0x80] sm:$0xff]
    %v71 = vld [vmem:[#allocation3 + $0x88] sm:$0xf]
    %v72 = vld [vmem:[#allocation3 + $0x8c] sm:$0xff]
    %v73 = vld [vmem:[#allocation3 + $0x94] sm:$0xff]
    %v74 = vld [vmem:[#allocation3 + $0x9c] sm:$0xf]
    %v75 = vld [vmem:[#allocation3 + $0xa0] sm:$0xff]
    %v76 = vld [vmem:[#allocation3 + $0xa8] sm:$0xff]
    %v77 = vld [vmem:[#allocation3 + $0xb0] sm:$0xf]
    %v78 = vld [vmem:[#allocation3 + $0xb4] sm:$0xff]
    %v79 = vld [vmem:[#allocation3 + $0xbc] sm:$0xff]
    %v80 = vld [vmem:[#allocation3 + $0xc4] sm:$0xf]
    %v81 = vld [vmem:[#allocation3 + $0xc8] sm:$0xff]
    %v82 = vld [vmem:[#allocation3 + $0xd0] sm:$0xff]
    %v83 = vld [vmem:[#allocation3 + $0xd8] sm:$0xf]
    %v84 = vld [vmem:[#allocation3 + $0xdc] sm:$0xff]
    %v85 = vld [vmem:[#allocation3 + $0xe4] sm:$0xff]
    %v86 = vld [vmem:[#allocation3 + $0xec] sm:$0xf]
    %v87 = vld [vmem:[#allocation3 + $0xf0] sm:$0xff]
    %v88 = vld [vmem:[#allocation3 + $0xf8] sm:$0xff]
    %v89 = vld [vmem:[#allocation3 + $0x100] sm:$0xf]
    %v90 = vld [vmem:[#allocation3 + $0x104] sm:$0xff]
    %v91 = vld [vmem:[#allocation3 + $0x10c] sm:$0xff]
    %v92 = vld [vmem:[#allocation3 + $0x114] sm:$0xf]
    %v93 = vld [vmem:[#allocation3 + $0x118] sm:$0xff]
    %v94 = vld [vmem:[#allocation3 + $0x120] sm:$0xff]
    %v95 = vld [vmem:[#allocation3 + $0x128] sm:$0xf]
    %v96 = vld [vmem:[#allocation3 + $0x12c] sm:$0xff]
    %v97 = vld [vmem:[#allocation3 + $0x134] sm:$0xff]
    %v98 = vld [vmem:[#allocation3 + $0x13c] sm:$0xf]
    %v99 = vld [vmem:[#allocation3 + $0x140] sm:$0xff]
    %v100 = vld [vmem:[#allocation3 + $0x148] sm:$0xff]
    %v101 = vld [vmem:[#allocation3 + $0x150] sm:$0xf]
    %v102 = vld [vmem:[#allocation3 + $0x154] sm:$0xff]
    %v103 = vld [vmem:[#allocation3 + $0x15c] sm:$0xff]
    %v104 = vld [vmem:[#allocation3 + $0x164] sm:$0xf]
    %v105 = vld [vmem:[#allocation3 + $0x168] sm:$0xff]
    %v106 = vld [vmem:[#allocation3 + $0x170] sm:$0xff]
    %v107 = vld [vmem:[#allocation3 + $0x178] sm:$0xf]
    %v108 = vld [vmem:[#allocation3 + $0x17c] sm:$0xff]
    %v109 = vld [vmem:[#allocation3 + $0x184] sm:$0xff]
    %v110 = vld [vmem:[#allocation3 + $0x18c] sm:$0xf]
    %v111 = vld [vmem:[#allocation3 + $0x190] sm:$0xff]
    %v112 = vld [vmem:[#allocation3 + $0x198] sm:$0xff]
    %v113 = vld [vmem:[#allocation3 + $0x1a0] sm:$0xf]
    %v114 = vld [vmem:[#allocation3 + $0x1a4] sm:$0xff]
    %v115 = vld [vmem:[#allocation3 + $0x1ac] sm:$0xff]
    %v116 = vld [vmem:[#allocation3 + $0x1b4] sm:$0xf]
    %v117 = vld [vmem:[#allocation3 + $0x1b8] sm:$0xff]
    %v118 = vld [vmem:[#allocation3 + $0x1c0] sm:$0xff]
    %v119 = vld [vmem:[#allocation3 + $0x1c8] sm:$0xf]
    %v120 = vld [vmem:[#allocation3 + $0x1cc] sm:$0xff]
    %v121 = vld [vmem:[#allocation3 + $0x1d4] sm:$0xff]
    %v122 = vld [vmem:[#allocation3 + $0x1dc] sm:$0xf]
    %v123 = vld [vmem:[#allocation3 + $0x1e0] sm:$0xff]
    %v124 = vld [vmem:[#allocation3 + $0x1e8] sm:$0xff]
    %v125 = vld [vmem:[#allocation3 + $0x1f0] sm:$0xf]
    %v126 = vld [vmem:[#allocation3 + $0x1f4] sm:$0xff]
    %v127 = vld [vmem:[#allocation3 + $0x1fc] sm:$0xff]
    %v128 = vld [vmem:[#allocation3 + $0x204] sm:$0xf]
    %v129 = vld [vmem:[#allocation3 + $0x208] sm:$0xff]
    %v130 = vld [vmem:[#allocation3 + $0x210] sm:$0xff]
    %v131 = vld [vmem:[#allocation3 + $0x218] sm:$0xf]
    %v132 = vld [vmem:[#allocation3 + $0x21c] sm:$0xff]
    %v133 = vld [vmem:[#allocation3 + $0x224] sm:$0xff]
    %v134 = vld [vmem:[#allocation3 + $0x22c] sm:$0xf]
    %v135 = vld [vmem:[#allocation3 + $0x230] sm:$0xff]
    %v136 = vld [vmem:[#allocation3 + $0x238] sm:$0xff]
    %v137 = vld [vmem:[#allocation3 + $0x240] sm:$0xf]
    %v138 = vld [vmem:[#allocation3 + $0x244] sm:$0xff]
    %v139 = vld [vmem:[#allocation3 + $0x24c] sm:$0xff]
    %v140 = vld [vmem:[#allocation3 + $0x254] sm:$0xf]
    %v141 = vld [vmem:[#allocation3 + $0x258] sm:$0xff]
    %v142 = vld [vmem:[#allocation3 + $0x260] sm:$0xff]
    %v143 = vld [vmem:[#allocation3 + $0x268] sm:$0xf]
    %v144 = vld [vmem:[#allocation3 + $0x26c] sm:$0xff]
    %v145 = vld [vmem:[#allocation3 + $0x274] sm:$0xff]
    %v146 = vld [vmem:[#allocation3 + $0x27c] sm:$0xf]
    %v147 = vld [vmem:[%s2] sm:$0x1f]
    %v149 = vlaneseq
    %v150 = vshrl.u32 %v149, 7
    %v151 = vsub.s32 0, %v150
    %v152 = vrot.slane %v147, %v151
    %v153 = vlaneseq
    %v154 = vshrl.u32 %v153, 7
    %v155 = vsub.s32 1, %v154
    %v156 = vrot.slane %v147, %v155
    %v157 = vlaneseq
    %v158 = vshrl.u32 %v157, 7
    %v159 = vsub.s32 2, %v158
    %v160 = vrot.slane %v147, %v159
    %v161 = vlaneseq
    %v162 = vshrl.u32 %v161, 7
    %v163 = vsub.s32 3, %v162
    %v164 = vrot.slane %v147, %v163
    %v165 = vlaneseq
    %v166 = vshrl.u32 %v165, 7
    %v167 = vsub.s32 4, %v166
    %v168 = vrot.slane %v147, %v167
    %v176 = vunpack.c.l.s4 1966171168
    %v177 = vunpack.c.0.s8 %v176
    %v178 = vlaneseq
    %v179 = vshrl.u32 %v178, 7
    %v180 = vsub.s32 %v177, %v179
    %v181 = vrot.slane %v50, %v180
    %v182 = vcombine.high %v181, %v181
    %v184 = vunpack.c.l.s4 1966171168
    %v185 = vunpack.c.0.s8 %v184
    %v186 = vlaneseq
    %v187 = vshrl.u32 %v186, 7
    %v188 = vsub.s32 %v185, %v187
    %v189 = vrot.slane %v181, %v188
    %v191 = vunpack.c.l.s4 1966171168
    %v192 = vunpack.c.0.s8 %v191
    %v193 = vlaneseq
    %v194 = vshrl.u32 %v193, 7
    %v195 = vsub.s32 %v192, %v194
    %v196 = vrot.slane %v182, %v195
    %v295 = vunpack.c.l.b16 %v51
    %v296 = vunpack.c.h.b16 %v51
    %v297 = vunpack.c.l.b16 %v52
    %v298 = vunpack.c.h.b16 %v52
    %v299 = vunpack.c.l.b16 %v53
    %v300 = vunpack.c.l.b16 %v54
    %v301 = vunpack.c.h.b16 %v54
    %v302 = vunpack.c.l.b16 %v55
    %v303 = vunpack.c.h.b16 %v55
    %v304 = vunpack.c.l.b16 %v56
    %v305 = vunpack.c.l.b16 %v57
    %v306 = vunpack.c.h.b16 %v57
    %v307 = vunpack.c.l.b16 %v58
    %v308 = vunpack.c.h.b16 %v58
    %v309 = vunpack.c.l.b16 %v59
    %v310 = vunpack.c.l.b16 %v60
    %v311 = vunpack.c.h.b16 %v60
    %v312 = vunpack.c.l.b16 %v61
    %v313 = vunpack.c.h.b16 %v61
    %v314 = vunpack.c.l.b16 %v62
    %v315 = vunpack.c.l.b16 %v63
    %v316 = vunpack.c.h.b16 %v63
    %v317 = vunpack.c.l.b16 %v64
    %v318 = vunpack.c.h.b16 %v64
    %v319 = vunpack.c.l.b16 %v65
    %v320 = vunpack.c.l.b16 %v66
    %v321 = vunpack.c.h.b16 %v66
    %v322 = vunpack.c.l.b16 %v67
    %v323 = vunpack.c.h.b16 %v67
    %v324 = vunpack.c.l.b16 %v68
    %v325 = vunpack.c.l.b16 %v69
    %v326 = vunpack.c.h.b16 %v69
    %v327 = vunpack.c.l.b16 %v70
    %v328 = vunpack.c.h.b16 %v70
    %v329 = vunpack.c.l.b16 %v71
    %v330 = vunpack.c.l.b16 %v72
    %v331 = vunpack.c.h.b16 %v72
    %v332 = vunpack.c.l.b16 %v73
    %v333 = vunpack.c.h.b16 %v73
    %v334 = vunpack.c.l.b16 %v74
    %v335 = vunpack.c.l.b16 %v75
    %v336 = vunpack.c.h.b16 %v75
    %v337 = vunpack.c.l.b16 %v76
    %v338 = vunpack.c.h.b16 %v76
    %v339 = vunpack.c.l.b16 %v77
    %v340 = vunpack.c.l.b16 %v78
    %v341 = vunpack.c.h.b16 %v78
    %v342 = vunpack.c.l.b16 %v79
    %v343 = vunpack.c.h.b16 %v79
    %v344 = vunpack.c.l.b16 %v80
    %v345 = vunpack.c.l.b16 %v81
    %v346 = vunpack.c.h.b16 %v81
    %v347 = vunpack.c.l.b16 %v82
    %v348 = vunpack.c.h.b16 %v82
    %v349 = vunpack.c.l.b16 %v83
    %v350 = vunpack.c.l.b16 %v84
    %v351 = vunpack.c.h.b16 %v84
    %v352 = vunpack.c.l.b16 %v85
    %v353 = vunpack.c.h.b16 %v85
    %v354 = vunpack.c.l.b16 %v86
    %v355 = vunpack.c.l.b16 %v87
    %v356 = vunpack.c.h.b16 %v87
    %v357 = vunpack.c.l.b16 %v88
    %v358 = vunpack.c.h.b16 %v88
    %v359 = vunpack.c.l.b16 %v89
    %v360 = vunpack.c.l.b16 %v90
    %v361 = vunpack.c.h.b16 %v90
    %v362 = vunpack.c.l.b16 %v91
    %v363 = vunpack.c.h.b16 %v91
    %v364 = vunpack.c.l.b16 %v92
    %v365 = vunpack.c.l.b16 %v93
    %v366 = vunpack.c.h.b16 %v93
    %v367 = vunpack.c.l.b16 %v94
    %v368 = vunpack.c.h.b16 %v94
    %v369 = vunpack.c.l.b16 %v95
    %v370 = vunpack.c.l.b16 %v96
    %v371 = vunpack.c.h.b16 %v96
    %v372 = vunpack.c.l.b16 %v97
    %v373 = vunpack.c.h.b16 %v97
    %v374 = vunpack.c.l.b16 %v98
    %v375 = vunpack.c.l.b16 %v99
    %v376 = vunpack.c.h.b16 %v99
    %v377 = vunpack.c.l.b16 %v100
    %v378 = vunpack.c.h.b16 %v100
    %v379 = vunpack.c.l.b16 %v101
    %v380 = vunpack.c.l.b16 %v102
    %v381 = vunpack.c.h.b16 %v102
    %v382 = vunpack.c.l.b16 %v103
    %v383 = vunpack.c.h.b16 %v103
    %v384 = vunpack.c.l.b16 %v104
    %v385 = vunpack.c.l.b16 %v105
    %v386 = vunpack.c.h.b16 %v105
    %v387 = vunpack.c.l.b16 %v106
    %v388 = vunpack.c.h.b16 %v106
    %v389 = vunpack.c.l.b16 %v107
    %v390 = vunpack.c.l.b16 %v108
    %v391 = vunpack.c.h.b16 %v108
    %v392 = vunpack.c.l.b16 %v109
    %v393 = vunpack.c.h.b16 %v109
    %v394 = vunpack.c.l.b16 %v110
    %v395 = vunpack.c.l.b16 %v111
    %v396 = vunpack.c.h.b16 %v111
    %v397 = vunpack.c.l.b16 %v112
    %v398 = vunpack.c.h.b16 %v112
    %v399 = vunpack.c.l.b16 %v113
    %v400 = vunpack.c.l.b16 %v114
    %v401 = vunpack.c.h.b16 %v114
    %v402 = vunpack.c.l.b16 %v115
    %v403 = vunpack.c.h.b16 %v115
    %v404 = vunpack.c.l.b16 %v116
    %v405 = vunpack.c.l.b16 %v117
    %v406 = vunpack.c.h.b16 %v117
    %v407 = vunpack.c.l.b16 %v118
    %v408 = vunpack.c.h.b16 %v118
    %v409 = vunpack.c.l.b16 %v119
    %v410 = vunpack.c.l.b16 %v120
    %v411 = vunpack.c.h.b16 %v120
    %v412 = vunpack.c.l.b16 %v121
    %v413 = vunpack.c.h.b16 %v121
    %v414 = vunpack.c.l.b16 %v122
    %v415 = vunpack.c.l.b16 %v123
    %v416 = vunpack.c.h.b16 %v123
    %v417 = vunpack.c.l.b16 %v124
    %v418 = vunpack.c.h.b16 %v124
    %v419 = vunpack.c.l.b16 %v125
    %v420 = vunpack.c.l.b16 %v126
    %v421 = vunpack.c.h.b16 %v126
    %v422 = vunpack.c.l.b16 %v127
    %v423 = vunpack.c.h.b16 %v127
    %v424 = vunpack.c.l.b16 %v128
    %v425 = vunpack.c.l.b16 %v129
    %v426 = vunpack.c.h.b16 %v129
    %v427 = vunpack.c.l.b16 %v130
    %v428 = vunpack.c.h.b16 %v130
    %v429 = vunpack.c.l.b16 %v131
    %v430 = vunpack.c.l.b16 %v132
    %v431 = vunpack.c.h.b16 %v132
    %v432 = vunpack.c.l.b16 %v133
    %v433 = vunpack.c.h.b16 %v133
    %v434 = vunpack.c.l.b16 %v134
    %v435 = vunpack.c.l.b16 %v135
    %v436 = vunpack.c.h.b16 %v135
    %v437 = vunpack.c.l.b16 %v136
    %v438 = vunpack.c.h.b16 %v136
    %v439 = vunpack.c.l.b16 %v137
    %v440 = vunpack.c.l.b16 %v138
    %v441 = vunpack.c.h.b16 %v138
    %v442 = vunpack.c.l.b16 %v139
    %v443 = vunpack.c.h.b16 %v139
    %v444 = vunpack.c.l.b16 %v140
    %v445 = vunpack.c.l.b16 %v141
    %v446 = vunpack.c.h.b16 %v141
    %v447 = vunpack.c.l.b16 %v142
    %v448 = vunpack.c.h.b16 %v142
    %v449 = vunpack.c.l.b16 %v143
    %v450 = vunpack.c.l.b16 %v144
    %v451 = vunpack.c.h.b16 %v144
    %v452 = vunpack.c.l.b16 %v145
    %v453 = vunpack.c.h.b16 %v145
    %v454 = vunpack.c.l.b16 %v146
    %v455 = vpack.c.b16 %v300, %v295
    %v456 = vpack.c.b16 %v301, %v296
    %v457 = vpack.c.b16 %v302, %v297
    %v458 = vpack.c.b16 %v303, %v298
    %v459 = vpack.c.b16 %v304, %v299
    %v460 = vpack.c.b16 %v310, %v305
    %v461 = vpack.c.b16 %v311, %v306
    %v462 = vpack.c.b16 %v312, %v307
    %v463 = vpack.c.b16 %v313, %v308
    %v464 = vpack.c.b16 %v314, %v309
    %v465 = vpack.c.b16 %v320, %v315
    %v466 = vpack.c.b16 %v321, %v316
    %v467 = vpack.c.b16 %v322, %v317
    %v468 = vpack.c.b16 %v323, %v318
    %v469 = vpack.c.b16 %v324, %v319
    %v470 = vpack.c.b16 %v330, %v325
    %v471 = vpack.c.b16 %v331, %v326
    %v472 = vpack.c.b16 %v332, %v327
    %v473 = vpack.c.b16 %v333, %v328
    %v474 = vpack.c.b16 %v334, %v329
    %v475 = vpack.c.b16 %v340, %v335
    %v476 = vpack.c.b16 %v341, %v336
    %v477 = vpack.c.b16 %v342, %v337
    %v478 = vpack.c.b16 %v343, %v338
    %v479 = vpack.c.b16 %v344, %v339
    %v480 = vpack.c.b16 %v350, %v345
    %v481 = vpack.c.b16 %v351, %v346
    %v482 = vpack.c.b16 %v352, %v347
    %v483 = vpack.c.b16 %v353, %v348
    %v484 = vpack.c.b16 %v354, %v349
    %v485 = vpack.c.b16 %v360, %v355
    %v486 = vpack.c.b16 %v361, %v356
    %v487 = vpack.c.b16 %v362, %v357
    %v488 = vpack.c.b16 %v363, %v358
    %v489 = vpack.c.b16 %v364, %v359
    %v490 = vpack.c.b16 %v370, %v365
    %v491 = vpack.c.b16 %v371, %v366
    %v492 = vpack.c.b16 %v372, %v367
    %v493 = vpack.c.b16 %v373, %v368
    %v494 = vpack.c.b16 %v374, %v369
    %v495 = vpack.c.b16 %v380, %v375
    %v496 = vpack.c.b16 %v381, %v376
    %v497 = vpack.c.b16 %v382, %v377
    %v498 = vpack.c.b16 %v383, %v378
    %v499 = vpack.c.b16 %v384, %v379
    %v500 = vpack.c.b16 %v390, %v385
    %v501 = vpack.c.b16 %v391, %v386
    %v502 = vpack.c.b16 %v392, %v387
    %v503 = vpack.c.b16 %v393, %v388
    %v504 = vpack.c.b16 %v394, %v389
    %v505 = vpack.c.b16 %v400, %v395
    %v506 = vpack.c.b16 %v401, %v396
    %v507 = vpack.c.b16 %v402, %v397
    %v508 = vpack.c.b16 %v403, %v398
    %v509 = vpack.c.b16 %v404, %v399
    %v510 = vpack.c.b16 %v410, %v405
    %v511 = vpack.c.b16 %v411, %v406
    %v512 = vpack.c.b16 %v412, %v407
    %v513 = vpack.c.b16 %v413, %v408
    %v514 = vpack.c.b16 %v414, %v409
    %v515 = vpack.c.b16 %v420, %v415
    %v516 = vpack.c.b16 %v421, %v416
    %v517 = vpack.c.b16 %v422, %v417
    %v518 = vpack.c.b16 %v423, %v418
    %v519 = vpack.c.b16 %v424, %v419
    %v520 = vpack.c.b16 %v430, %v425
    %v521 = vpack.c.b16 %v431, %v426
    %v522 = vpack.c.b16 %v432, %v427
    %v523 = vpack.c.b16 %v433, %v428
    %v524 = vpack.c.b16 %v434, %v429
    %v525 = vpack.c.b16 %v440, %v435
    %v526 = vpack.c.b16 %v441, %v436
    %v527 = vpack.c.b16 %v442, %v437
    %v528 = vpack.c.b16 %v443, %v438
    %v529 = vpack.c.b16 %v444, %v439
    %v530 = vpack.c.b16 %v450, %v445
    %v531 = vpack.c.b16 %v451, %v446
    %v532 = vpack.c.b16 %v452, %v447
    %v533 = vpack.c.b16 %v453, %v448
    %v534 = vpack.c.b16 %v454, %v449
    %615 = vmatprep.subr.bf16.mxu0 %v491
    %616 = vmatpush1.bf16.msra.mxu0 %v490
    %617 = vmatprep.subr.bf16.mxu0 %v486
    %618 = vmatpush1.bf16.msra.mxu0 %v485
    %619 = vmatprep.subr.bf16.mxu0 %v481
    %620 = vmatpush1.bf16.msra.mxu0 %v480
    %621 = vmatprep.subr.bf16.mxu0 %v476
    %622 = vmatpush1.bf16.msra.mxu0 %v475
    %623 = vmatprep.subr.bf16.mxu0 %v471
    %624 = vmatpush1.bf16.msra.mxu0 %v470
    %625 = vmatprep.subr.bf16.mxu0 %v466
    %626 = vmatpush1.bf16.msra.mxu0 %v465
    %627 = vmatprep.subr.bf16.mxu0 %v461
    %628 = vmatpush1.bf16.msra.mxu0 %v460
    %629 = vmatprep.subr.bf16.mxu0 %v456
    %630 = vmatpush1.bf16.msra.mxu0 %v455
    %631 = vmatprep.subr.bf16.mxu0 %v531
    %632 = vmatpush2.bf16.msra.mxu0 %v530
    %633 = vmatprep.subr.bf16.mxu0 %v526
    %634 = vmatpush2.bf16.msra.mxu0 %v525
    %635 = vmatprep.subr.bf16.mxu0 %v521
    %636 = vmatpush2.bf16.msra.mxu0 %v520
    %637 = vmatprep.subr.bf16.mxu0 %v516
    %638 = vmatpush2.bf16.msra.mxu0 %v515
    %639 = vmatprep.subr.bf16.mxu0 %v511
    %640 = vmatpush2.bf16.msra.mxu0 %v510
    %641 = vmatprep.subr.bf16.mxu0 %v506
    %642 = vmatpush2.bf16.msra.mxu0 %v505
    %643 = vmatprep.subr.bf16.mxu0 %v501
    %644 = vmatpush2.bf16.msra.mxu0 %v500
    %645 = vmatprep.subr.bf16.mxu0 %v496
    %646 = vmatpush2.bf16.msra.mxu0 %v495
    %647 = vmatprep.mubr.bf16.mxu0 %v196
    %648 = vmatmul.mubr.bf16.gmra.mxu0 %v189
    %v649 = vpop.f32.mrf.mxu0
    %v650 = vadd.f32 %v152, %v649
    %v651 = vpop.f32.mrf.mxu0
    %v652 = vadd.f32 %v156, %v651
    %v653 = vpop.f32.mrf.mxu0
    %v654 = vpop.f32.mrf.mxu0
    %655 = vdwg.mxu0
    %656 = vmatprep.subr.bf16.mxu0 %v493
    %657 = vmatpush1.bf16.msra.mxu0 %v492
    %658 = vmatprep.subr.bf16.mxu0 %v488
    %659 = vmatpush1.bf16.msra.mxu0 %v487
    %660 = vmatprep.subr.bf16.mxu0 %v483
    %661 = vmatpush1.bf16.msra.mxu0 %v482
    %662 = vmatprep.subr.bf16.mxu0 %v478
    %663 = vmatpush1.bf16.msra.mxu0 %v477
    %664 = vmatprep.subr.bf16.mxu0 %v473
    %665 = vmatpush1.bf16.msra.mxu0 %v472
    %666 = vmatprep.subr.bf16.mxu0 %v468
    %667 = vmatpush1.bf16.msra.mxu0 %v467
    %668 = vmatprep.subr.bf16.mxu0 %v463
    %669 = vmatpush1.bf16.msra.mxu0 %v462
    %670 = vmatprep.subr.bf16.mxu0 %v458
    %671 = vmatpush1.bf16.msra.mxu0 %v457
    %672 = vmatprep.subr.bf16.mxu0 %v533
    %673 = vmatpush2.bf16.msra.mxu0 %v532
    %674 = vmatprep.subr.bf16.mxu0 %v528
    %675 = vmatpush2.bf16.msra.mxu0 %v527
    %676 = vmatprep.subr.bf16.mxu0 %v523
    %677 = vmatpush2.bf16.msra.mxu0 %v522
    %678 = vmatprep.subr.bf16.mxu0 %v518
    %679 = vmatpush2.bf16.msra.mxu0 %v517
    %680 = vmatprep.subr.bf16.mxu0 %v513
    %681 = vmatpush2.bf16.msra.mxu0 %v512
    %682 = vmatprep.subr.bf16.mxu0 %v508
    %683 = vmatpush2.bf16.msra.mxu0 %v507
    %684 = vmatprep.subr.bf16.mxu0 %v503
    %685 = vmatpush2.bf16.msra.mxu0 %v502
    %686 = vmatprep.subr.bf16.mxu0 %v498
    %687 = vmatpush2.bf16.msra.mxu0 %v497
    %688 = vmatprep.mubr.bf16.mxu0 %v196
    %689 = vmatmul.mubr.bf16.gmra.mxu0 %v189
    %v690 = vpop.f32.mrf.mxu0
    %v691 = vadd.f32 %v160, %v690
    %v692 = vpop.f32.mrf.mxu0
    %v693 = vadd.f32 %v164, %v692
    %v694 = vpop.f32.mrf.mxu0
    %v695 = vpop.f32.mrf.mxu0
    %696 = vdwg.mxu0
    %697 = vmatprep.subr.bf16.mxu0 0
    %698 = vmatpush1.bf16.msra.mxu0 %v494
    %699 = vmatprep.subr.bf16.mxu0 0
    %700 = vmatpush1.bf16.msra.mxu0 %v489
    %701 = vmatprep.subr.bf16.mxu0 0
    %702 = vmatpush1.bf16.msra.mxu0 %v484
    %703 = vmatprep.subr.bf16.mxu0 0
    %704 = vmatpush1.bf16.msra.mxu0 %v479
    %705 = vmatprep.subr.bf16.mxu0 0
    %706 = vmatpush1.bf16.msra.mxu0 %v474
    %707 = vmatprep.subr.bf16.mxu0 0
    %708 = vmatpush1.bf16.msra.mxu0 %v469
    %709 = vmatprep.subr.bf16.mxu0 0
    %710 = vmatpush1.bf16.msra.mxu0 %v464
    %711 = vmatprep.subr.bf16.mxu0 0
    %712 = vmatpush1.bf16.msra.mxu0 %v459
    %713 = vmatprep.subr.bf16.mxu0 0
    %714 = vmatpush2.bf16.msra.mxu0 %v534
    %715 = vmatprep.subr.bf16.mxu0 0
    %716 = vmatpush2.bf16.msra.mxu0 %v529
    %717 = vmatprep.subr.bf16.mxu0 0
    %718 = vmatpush2.bf16.msra.mxu0 %v524
    %719 = vmatprep.subr.bf16.mxu0 0
    %720 = vmatpush2.bf16.msra.mxu0 %v519
    %721 = vmatprep.subr.bf16.mxu0 0
    %722 = vmatpush2.bf16.msra.mxu0 %v514
    %723 = vmatprep.subr.bf16.mxu0 0
    %724 = vmatpush2.bf16.msra.mxu0 %v509
    %725 = vmatprep.subr.bf16.mxu0 0
    %726 = vmatpush2.bf16.msra.mxu0 %v504
    %727 = vmatprep.subr.bf16.mxu0 0
    %728 = vmatpush2.bf16.msra.mxu0 %v499
    %729 = vmatprep.mubr.bf16.mxu0 %v196
    %730 = vmatmul.mubr.bf16.gmra.mxu0 %v189
    %v731 = vpop.f32.mrf.mxu0
    %v732 = vadd.f32 %v168, %v731
    %v733 = vpop.f32.mrf.mxu0
    %v734 = vpop.f32.mrf.mxu0
    %v735 = vpop.f32.mrf.mxu0
    %736 = vdwg.mxu0
    %v737 = vmax.f32 %v650, 0.0
    %v738 = vmax.f32 %v652, 0.0
    %v739 = vmax.f32 %v691, 0.0
    %v740 = vmax.f32 %v693, 0.0
    %v741 = vmax.f32 %v732, 0.0
    %v742 = vpack.c.bf16 %v737, %v737
    %v743 = vpack.c.bf16 %v738, %v738
    %v744 = vpack.c.bf16 %v739, %v739
    %v745 = vpack.c.bf16 %v740, %v740
    %v746 = vpack.c.bf16 %v741, %v741
    %v747 = vld [vmem:[%s3] sm:$0xf]
    %v748 = vld [vmem:[%s3 + $0x4] sm:$0xf]
    %v749 = vld [vmem:[%s3 + $0x8] sm:$0xf]
    %v750 = vld [vmem:[%s3 + $0xc] sm:$0xf]
    %v751 = vld [vmem:[%s3 + $0x10] sm:$0xf]
    %v752 = vld [vmem:[%s3 + $0x14] sm:$0xf]
    %v753 = vld [vmem:[%s3 + $0x18] sm:$0xf]
    %v754 = vld [vmem:[%s3 + $0x1c] sm:$0xf]
    %v755 = vld [vmem:[%s3 + $0x20] sm:$0xf]
    %v756 = vld [vmem:[%s3 + $0x24] sm:$0xf]
    %v757 = vld [vmem:[%s3 + $0x28] sm:$0xf]
    %v758 = vld [vmem:[%s3 + $0x2c] sm:$0xf]
    %v759 = vld [vmem:[%s3 + $0x30] sm:$0xf]
    %v760 = vld [vmem:[%s3 + $0x34] sm:$0xf]
    %v761 = vld [vmem:[%s3 + $0x38] sm:$0xf]
    %v762 = vld [vmem:[%s3 + $0x3c] sm:$0xf]
    %v763 = vld [vmem:[%s3 + $0x40] sm:$0xf]
    %v764 = vld [vmem:[%s3 + $0x44] sm:$0xf]
    %v765 = vld [vmem:[%s3 + $0x48] sm:$0xf]
    %v766 = vld [vmem:[%s3 + $0x4c] sm:$0xf]
    %v767 = vld [vmem:[%s3 + $0x50] sm:$0xf]
    %v768 = vld [vmem:[%s3 + $0x54] sm:$0xf]
    %v769 = vld [vmem:[%s3 + $0x58] sm:$0xf]
    %v770 = vld [vmem:[%s3 + $0x5c] sm:$0xf]
    %v771 = vld [vmem:[%s3 + $0x60] sm:$0xf]
    %v772 = vld [vmem:[%s3 + $0x64] sm:$0xf]
    %v773 = vld [vmem:[%s3 + $0x68] sm:$0xf]
    %v774 = vld [vmem:[%s3 + $0x6c] sm:$0xf]
    %v775 = vld [vmem:[%s3 + $0x70] sm:$0xf]
    %v776 = vld [vmem:[%s3 + $0x74] sm:$0xf]
    %v777 = vld [vmem:[%s3 + $0x78] sm:$0xf]
    %v778 = vld [vmem:[%s3 + $0x7c] sm:$0xf]
    %v779 = vld [vmem:[%s3 + $0x80] sm:$0xf]
    %v780 = vld [vmem:[%s3 + $0x84] sm:$0xf]
    %v781 = vld [vmem:[%s3 + $0x88] sm:$0xf]
    %v782 = vld [vmem:[%s3 + $0x8c] sm:$0xf]
    %v783 = vld [vmem:[%s3 + $0x90] sm:$0xf]
    %v784 = vld [vmem:[%s3 + $0x94] sm:$0xf]
    %v785 = vld [vmem:[%s3 + $0x98] sm:$0xf]
    %v786 = vld [vmem:[%s3 + $0x9c] sm:$0xf]
    %v787 = vld [vmem:[%s3 + $0xa0] sm:$0xf]
    %v788 = vld [vmem:[%s3 + $0xa4] sm:$0xf]
    %v789 = vld [vmem:[%s3 + $0xa8] sm:$0xf]
    %v790 = vld [vmem:[%s3 + $0xac] sm:$0xf]
    %v791 = vld [vmem:[%s3 + $0xb0] sm:$0xf]
    %v792 = vld [vmem:[%s3 + $0xb4] sm:$0xf]
    %v793 = vld [vmem:[%s3 + $0xb8] sm:$0xf]
    %v794 = vld [vmem:[%s3 + $0xbc] sm:$0xf]
    %v795 = vld [vmem:[%s3 + $0xc0] sm:$0xf]
    %v796 = vld [vmem:[%s3 + $0xc4] sm:$0xf]
    %v797 = vld [vmem:[%s3 + $0xc8] sm:$0xf]
    %v798 = vld [vmem:[%s3 + $0xcc] sm:$0xf]
    %v799 = vld [vmem:[%s3 + $0xd0] sm:$0xf]
    %v800 = vld [vmem:[%s3 + $0xd4] sm:$0xf]
    %v801 = vld [vmem:[%s3 + $0xd8] sm:$0xf]
    %v802 = vld [vmem:[%s3 + $0xdc] sm:$0xf]
    %v803 = vld [vmem:[%s3 + $0xe0] sm:$0xf]
    %v804 = vld [vmem:[%s3 + $0xe4] sm:$0xf]
    %v805 = vld [vmem:[%s3 + $0xe8] sm:$0xf]
    %v806 = vld [vmem:[%s3 + $0xec] sm:$0xf]
    %v807 = vld [vmem:[%s3 + $0xf0] sm:$0xf]
    %v808 = vld [vmem:[%s3 + $0xf4] sm:$0xf]
    %v809 = vld [vmem:[%s3 + $0xf8] sm:$0xf]
    %v810 = vld [vmem:[%s3 + $0xfc] sm:$0xf]
    %v811 = vld [vmem:[%s3 + $0x100] sm:$0xf]
    %v812 = vld [vmem:[%s3 + $0x104] sm:$0xf]
    %v813 = vld [vmem:[%s3 + $0x108] sm:$0xf]
    %v814 = vld [vmem:[%s3 + $0x10c] sm:$0xf]
    %v815 = vld [vmem:[%s3 + $0x110] sm:$0xf]
    %v816 = vld [vmem:[%s3 + $0x114] sm:$0xf]
    %v817 = vld [vmem:[%s3 + $0x118] sm:$0xf]
    %v818 = vld [vmem:[%s3 + $0x11c] sm:$0xf]
    %v819 = vld [vmem:[%s3 + $0x120] sm:$0xf]
    %v820 = vld [vmem:[%s3 + $0x124] sm:$0xf]
    %v821 = vld [vmem:[%s3 + $0x128] sm:$0xf]
    %v822 = vld [vmem:[%s3 + $0x12c] sm:$0xf]
    %v823 = vld [vmem:[%s3 + $0x130] sm:$0xf]
    %v824 = vld [vmem:[%s3 + $0x134] sm:$0xf]
    %v825 = vld [vmem:[%s3 + $0x138] sm:$0xf]
    %v826 = vld [vmem:[%s3 + $0x13c] sm:$0xf]
    %v827 = vld [vmem:[%s4] sm:$0x1]
    %v829 = vlaneseq
    %v830 = vshrl.u32 %v829, 7
    %v831 = vsub.s32 0, %v830
    %v832 = vrot.slane %v827, %v831
    %v914 = vunpack.c.l.b16 %v747
    %v915 = vunpack.c.l.b16 %v748
    %v916 = vunpack.c.l.b16 %v749
    %v917 = vunpack.c.l.b16 %v750
    %v918 = vunpack.c.l.b16 %v751
    %v919 = vunpack.c.l.b16 %v752
    %v920 = vunpack.c.l.b16 %v753
    %v921 = vunpack.c.l.b16 %v754
    %v922 = vunpack.c.l.b16 %v755
    %v923 = vunpack.c.l.b16 %v756
    %v924 = vunpack.c.l.b16 %v757
    %v925 = vunpack.c.l.b16 %v758
    %v926 = vunpack.c.l.b16 %v759
    %v927 = vunpack.c.l.b16 %v760
    %v928 = vunpack.c.l.b16 %v761
    %v929 = vunpack.c.l.b16 %v762
    %v930 = vunpack.c.l.b16 %v763
    %v931 = vunpack.c.l.b16 %v764
    %v932 = vunpack.c.l.b16 %v765
    %v933 = vunpack.c.l.b16 %v766
    %v934 = vunpack.c.l.b16 %v767
    %v935 = vunpack.c.l.b16 %v768
    %v936 = vunpack.c.l.b16 %v769
    %v937 = vunpack.c.l.b16 %v770
    %v938 = vunpack.c.l.b16 %v771
    %v939 = vunpack.c.l.b16 %v772
    %v940 = vunpack.c.l.b16 %v773
    %v941 = vunpack.c.l.b16 %v774
    %v942 = vunpack.c.l.b16 %v775
    %v943 = vunpack.c.l.b16 %v776
    %v944 = vunpack.c.l.b16 %v777
    %v945 = vunpack.c.l.b16 %v778
    %v946 = vunpack.c.l.b16 %v779
    %v947 = vunpack.c.l.b16 %v780
    %v948 = vunpack.c.l.b16 %v781
    %v949 = vunpack.c.l.b16 %v782
    %v950 = vunpack.c.l.b16 %v783
    %v951 = vunpack.c.l.b16 %v784
    %v952 = vunpack.c.l.b16 %v785
    %v953 = vunpack.c.l.b16 %v786
    %v954 = vunpack.c.l.b16 %v787
    %v955 = vunpack.c.l.b16 %v788
    %v956 = vunpack.c.l.b16 %v789
    %v957 = vunpack.c.l.b16 %v790
    %v958 = vunpack.c.l.b16 %v791
    %v959 = vunpack.c.l.b16 %v792
    %v960 = vunpack.c.l.b16 %v793
    %v961 = vunpack.c.l.b16 %v794
    %v962 = vunpack.c.l.b16 %v795
    %v963 = vunpack.c.l.b16 %v796
    %v964 = vunpack.c.l.b16 %v797
    %v965 = vunpack.c.l.b16 %v798
    %v966 = vunpack.c.l.b16 %v799
    %v967 = vunpack.c.l.b16 %v800
    %v968 = vunpack.c.l.b16 %v801
    %v969 = vunpack.c.l.b16 %v802
    %v970 = vunpack.c.l.b16 %v803
    %v971 = vunpack.c.l.b16 %v804
    %v972 = vunpack.c.l.b16 %v805
    %v973 = vunpack.c.l.b16 %v806
    %v974 = vunpack.c.l.b16 %v807
    %v975 = vunpack.c.l.b16 %v808
    %v976 = vunpack.c.l.b16 %v809
    %v977 = vunpack.c.l.b16 %v810
    %v978 = vunpack.c.l.b16 %v811
    %v979 = vunpack.c.l.b16 %v812
    %v980 = vunpack.c.l.b16 %v813
    %v981 = vunpack.c.l.b16 %v814
    %v982 = vunpack.c.l.b16 %v815
    %v983 = vunpack.c.l.b16 %v816
    %v984 = vunpack.c.l.b16 %v817
    %v985 = vunpack.c.l.b16 %v818
    %v986 = vunpack.c.l.b16 %v819
    %v987 = vunpack.c.l.b16 %v820
    %v988 = vunpack.c.l.b16 %v821
    %v989 = vunpack.c.l.b16 %v822
    %v990 = vunpack.c.l.b16 %v823
    %v991 = vunpack.c.l.b16 %v824
    %v992 = vunpack.c.l.b16 %v825
    %v993 = vunpack.c.l.b16 %v826
    %v994 = vpack.c.b16 %v915, %v914
    %v995 = vpack.c.b16 %v917, %v916
    %v996 = vpack.c.b16 %v919, %v918
    %v997 = vpack.c.b16 %v921, %v920
    %v998 = vpack.c.b16 %v923, %v922
    %v999 = vpack.c.b16 %v925, %v924
    %v1000 = vpack.c.b16 %v927, %v926
    %v1001 = vpack.c.b16 %v929, %v928
    %v1002 = vpack.c.b16 %v931, %v930
    %v1003 = vpack.c.b16 %v933, %v932
    %v1004 = vpack.c.b16 %v935, %v934
    %v1005 = vpack.c.b16 %v937, %v936
    %v1006 = vpack.c.b16 %v939, %v938
    %v1007 = vpack.c.b16 %v941, %v940
    %v1008 = vpack.c.b16 %v943, %v942
    %v1009 = vpack.c.b16 %v945, %v944
    %v1010 = vpack.c.b16 %v947, %v946
    %v1011 = vpack.c.b16 %v949, %v948
    %v1012 = vpack.c.b16 %v951, %v950
    %v1013 = vpack.c.b16 %v953, %v952
    %v1014 = vpack.c.b16 %v955, %v954
    %v1015 = vpack.c.b16 %v957, %v956
    %v1016 = vpack.c.b16 %v959, %v958
    %v1017 = vpack.c.b16 %v961, %v960
    %v1018 = vpack.c.b16 %v963, %v962
    %v1019 = vpack.c.b16 %v965, %v964
    %v1020 = vpack.c.b16 %v967, %v966
    %v1021 = vpack.c.b16 %v969, %v968
    %v1022 = vpack.c.b16 %v971, %v970
    %v1023 = vpack.c.b16 %v973, %v972
    %v1024 = vpack.c.b16 %v975, %v974
    %v1025 = vpack.c.b16 %v977, %v976
    %v1026 = vpack.c.b16 %v979, %v978
    %v1027 = vpack.c.b16 %v981, %v980
    %v1028 = vpack.c.b16 %v983, %v982
    %v1029 = vpack.c.b16 %v985, %v984
    %v1030 = vpack.c.b16 %v987, %v986
    %v1031 = vpack.c.b16 %v989, %v988
    %v1032 = vpack.c.b16 %v991, %v990
    %v1033 = vpack.c.b16 %v993, %v992
    %1074 = vmatprep.subr.bf16.mxu0 0
    %1075 = vmatpush1.bf16.msra.mxu0 %v1001
    %1076 = vmatprep.subr.bf16.mxu0 0
    %1077 = vmatpush1.bf16.msra.mxu0 %v1000
    %1078 = vmatprep.subr.bf16.mxu0 0
    %1079 = vmatpush1.bf16.msra.mxu0 %v999
    %1080 = vmatprep.subr.bf16.mxu0 0
    %1081 = vmatpush1.bf16.msra.mxu0 %v998
    %1082 = vmatprep.subr.bf16.mxu0 0
    %1083 = vmatpush1.bf16.msra.mxu0 %v997
    %1084 = vmatprep.subr.bf16.mxu0 0
    %1085 = vmatpush1.bf16.msra.mxu0 %v996
    %1086 = vmatprep.subr.bf16.mxu0 0
    %1087 = vmatpush1.bf16.msra.mxu0 %v995
    %1088 = vmatprep.subr.bf16.mxu0 0
    %1089 = vmatpush1.bf16.msra.mxu0 %v994
    %1090 = vmatprep.subr.bf16.mxu0 0
    %1091 = vmatpush2.bf16.msra.mxu0 %v1009
    %1092 = vmatprep.subr.bf16.mxu0 0
    %1093 = vmatpush2.bf16.msra.mxu0 %v1008
    %1094 = vmatprep.subr.bf16.mxu0 0
    %1095 = vmatpush2.bf16.msra.mxu0 %v1007
    %1096 = vmatprep.subr.bf16.mxu0 0
    %1097 = vmatpush2.bf16.msra.mxu0 %v1006
    %1098 = vmatprep.subr.bf16.mxu0 0
    %1099 = vmatpush2.bf16.msra.mxu0 %v1005
    %1100 = vmatprep.subr.bf16.mxu0 0
    %1101 = vmatpush2.bf16.msra.mxu0 %v1004
    %1102 = vmatprep.subr.bf16.mxu0 0
    %1103 = vmatpush2.bf16.msra.mxu0 %v1003
    %1104 = vmatprep.subr.bf16.mxu0 0
    %1105 = vmatpush2.bf16.msra.mxu0 %v1002
    %1106 = vmatprep.mubr.bf16.mxu0 %v743
    %1107 = vmatmul.mubr.bf16.gmra.mxu0 %v742
    %v1108 = vpop.f32.mrf.mxu0
    %v1109 = vadd.f32 %v832, %v1108
    %v1110 = vpop.f32.mrf.mxu0
    %v1111 = vpop.f32.mrf.mxu0
    %v1112 = vpop.f32.mrf.mxu0
    %1113 = vdwg.mxu0
    %1114 = vmatprep.subr.bf16.mxu0 0
    %1115 = vmatpush1.bf16.msra.mxu0 %v1017
    %1116 = vmatprep.subr.bf16.mxu0 0
    %1117 = vmatpush1.bf16.msra.mxu0 %v1016
    %1118 = vmatprep.subr.bf16.mxu0 0
    %1119 = vmatpush1.bf16.msra.mxu0 %v1015
    %1120 = vmatprep.subr.bf16.mxu0 0
    %1121 = vmatpush1.bf16.msra.mxu0 %v1014
    %1122 = vmatprep.subr.bf16.mxu0 0
    %1123 = vmatpush1.bf16.msra.mxu0 %v1013
    %1124 = vmatprep.subr.bf16.mxu0 0
    %1125 = vmatpush1.bf16.msra.mxu0 %v1012
    %1126 = vmatprep.subr.bf16.mxu0 0
    %1127 = vmatpush1.bf16.msra.mxu0 %v1011
    %1128 = vmatprep.subr.bf16.mxu0 0
    %1129 = vmatpush1.bf16.msra.mxu0 %v1010
    %1130 = vmatprep.subr.bf16.mxu0 0
    %1131 = vmatpush2.bf16.msra.mxu0 %v1025
    %1132 = vmatprep.subr.bf16.mxu0 0
    %1133 = vmatpush2.bf16.msra.mxu0 %v1024
    %1134 = vmatprep.subr.bf16.mxu0 0
    %1135 = vmatpush2.bf16.msra.mxu0 %v1023
    %1136 = vmatprep.subr.bf16.mxu0 0
    %1137 = vmatpush2.bf16.msra.mxu0 %v1022
    %1138 = vmatprep.subr.bf16.mxu0 0
    %1139 = vmatpush2.bf16.msra.mxu0 %v1021
    %1140 = vmatprep.subr.bf16.mxu0 0
    %1141 = vmatpush2.bf16.msra.mxu0 %v1020
    %1142 = vmatprep.subr.bf16.mxu0 0
    %1143 = vmatpush2.bf16.msra.mxu0 %v1019
    %1144 = vmatprep.subr.bf16.mxu0 0
    %1145 = vmatpush2.bf16.msra.mxu0 %v1018
    %1146 = vmatprep.mubr.bf16.mxu0 %v745
    %1147 = vmatmul.mubr.bf16.gmra.mxu0 %v744
    %v1148 = vpop.f32.mrf.mxu0
    %v1149 = vadd.f32 %v1109, %v1148
    %v1150 = vpop.f32.mrf.mxu0
    %v1151 = vpop.f32.mrf.mxu0
    %v1152 = vpop.f32.mrf.mxu0
    %1153 = vdwg.mxu0
    %1154 = vmatprep.subr.bf16.mxu0 0
    %1155 = vmatpush1.bf16.msra.mxu0 %v1033
    %1156 = vmatprep.subr.bf16.mxu0 0
    %1157 = vmatpush1.bf16.msra.mxu0 %v1032
    %1158 = vmatprep.subr.bf16.mxu0 0
    %1159 = vmatpush1.bf16.msra.mxu0 %v1031
    %1160 = vmatprep.subr.bf16.mxu0 0
    %1161 = vmatpush1.bf16.msra.mxu0 %v1030
    %1162 = vmatprep.subr.bf16.mxu0 0
    %1163 = vmatpush1.bf16.msra.mxu0 %v1029
    %1164 = vmatprep.subr.bf16.mxu0 0
    %1165 = vmatpush1.bf16.msra.mxu0 %v1028
    %1166 = vmatprep.subr.bf16.mxu0 0
    %1167 = vmatpush1.bf16.msra.mxu0 %v1027
    %1168 = vmatprep.subr.bf16.mxu0 0
    %1169 = vmatpush1.bf16.msra.mxu0 %v1026
    %1170 = vmatprep.subr.bf16.mxu0 0
    %1171 = vmatpush2.bf16.msra.mxu0 0
    %1172 = vmatprep.subr.bf16.mxu0 0
    %1173 = vmatpush2.bf16.msra.mxu0 0
    %1174 = vmatprep.subr.bf16.mxu0 0
    %1175 = vmatpush2.bf16.msra.mxu0 0
    %1176 = vmatprep.subr.bf16.mxu0 0
    %1177 = vmatpush2.bf16.msra.mxu0 0
    %1178 = vmatprep.subr.bf16.mxu0 0
    %1179 = vmatpush2.bf16.msra.mxu0 0
    %1180 = vmatprep.subr.bf16.mxu0 0
    %1181 = vmatpush2.bf16.msra.mxu0 0
    %1182 = vmatprep.subr.bf16.mxu0 0
    %1183 = vmatpush2.bf16.msra.mxu0 0
    %1184 = vmatprep.subr.bf16.mxu0 0
    %1185 = vmatpush2.bf16.msra.mxu0 0
    %1186 = vmatprep.mubr.bf16.mxu0 0
    %1187 = vmatmul.mubr.bf16.gmra.mxu0 %v746
    %v1188 = vpop.f32.mrf.mxu0
    %v1189 = vadd.f32 %v1149, %v1188
    %v1190 = vpop.f32.mrf.mxu0
    %v1191 = vpop.f32.mrf.mxu0
    %v1192 = vpop.f32.mrf.mxu0
    %1193 = vdwg.mxu0
    %v1194 = vmax.f32 %v1189, 0.0
    %v1195 = vld [vmem:[%s5] sm:$0xff]
    %v1196 = vld [vmem:[%s5 + $0x8] sm:$0x3]
    %v1197 = vld [vmem:[%s6] sm:$0xff]
    %v1198 = vld [vmem:[%s6 + $0x8] sm:$0x3]
    %1200 = vset.pattern.permute.xlu0 0
    %1201 = vperm.xlu0 %1200, %v1197
    %v1202 = vpop.permute.xlu0 %1201
    %1205 = vset.pattern.permute.xlu0 0
    %1206 = vperm.xlu0 %1205, %v1198
    %v1207 = vpop.permute.xlu0 %1206
    %vm1209 = vcmask 523264
    %v1211 = vsel %vm1209, %v1195, 0
    %v1214 = vsel %vm1209, %v1196, 0
    %v1217 = vsel %vm1209, %v1194, 0
    %1219 = vmatprep.subr.mxu0 0.0
    %1220 = vmatpush1.xpose.msra.mxu0 0.0
    %1221 = vmatprep.subr.mxu0 0.0
    %1222 = vmatpush1.xpose.msra.mxu0 0.0
    %1223 = vmatprep.subr.mxu0 0.0
    %1224 = vmatpush1.xpose.msra.mxu0 0.0
    %1225 = vmatprep.subr.mxu0 0.0
    %1226 = vmatpush1.xpose.msra.mxu0 0.0
    %1227 = vmatprep.subr.mxu0 0.0
    %1228 = vmatpush1.xpose.msra.mxu0 0.0
    %1229 = vmatprep.subr.mxu0 0.0
    %1230 = vmatpush1.xpose.msra.mxu0 0.0
    %1231 = vmatprep.subr.mxu0 0.0
    %1232 = vmatpush1.xpose.msra.mxu0 0.0
    %1233 = vmatprep.subr.mxu0 0.0
    %1234 = vmatpush1.xpose.msra.mxu0 0.0
    %1235 = vmatprep.subr.mxu0 0.0
    %1236 = vmatpush1.xpose.msra.mxu0 0.0
    %1237 = vmatprep.subr.mxu0 0.0
    %1238 = vmatpush1.xpose.msra.mxu0 0.0
    %1239 = vmatprep.subr.mxu0 0.0
    %1240 = vmatpush1.xpose.msra.mxu0 0.0
    %1241 = vmatprep.subr.mxu0 0.0
    %1242 = vmatpush1.xpose.msra.mxu0 0.0
    %1243 = vmatprep.subr.mxu0 0.0
    %1244 = vmatpush1.xpose.msra.mxu0 0.0
    %1245 = vmatprep.subr.mxu0 0.0
    %1246 = vmatpush1.xpose.msra.mxu0 0.0
    %1247 = vmatprep.subr.mxu0 0.0
    %1248 = vmatpush1.xpose.msra.mxu0 0.0
    %1249 = vmatprep.subr.mxu0 0.0
    %1250 = vmatpush1.xpose.msra.mxu0 %v1217
    %1251 = vmatprep.subr.mxu0 0.0
    %1252 = vmatpush2.xpose.msra.mxu0 0.0
    %1253 = vmatprep.subr.mxu0 0.0
    %1254 = vmatpush2.xpose.msra.mxu0 0.0
    %1255 = vmatprep.subr.mxu0 0.0
    %1256 = vmatpush2.xpose.msra.mxu0 0.0
    %1257 = vmatprep.subr.mxu0 0.0
    %1258 = vmatpush2.xpose.msra.mxu0 0.0
    %1259 = vmatprep.subr.mxu0 0.0
    %1260 = vmatpush2.xpose.msra.mxu0 0.0
    %1261 = vmatprep.subr.mxu0 0.0
    %1262 = vmatpush2.xpose.msra.mxu0 0.0
    %1263 = vmatprep.subr.mxu0 0.0
    %1264 = vmatpush2.xpose.msra.mxu0 0.0
    %1265 = vmatprep.subr.mxu0 0.0
    %1266 = vmatpush2.xpose.msra.mxu0 0.0
    %1267 = vmatprep.subr.mxu0 0.0
    %1268 = vmatpush2.xpose.msra.mxu0 0.0
    %1269 = vmatprep.subr.mxu0 0.0
    %1270 = vmatpush2.xpose.msra.mxu0 0.0
    %1271 = vmatprep.subr.mxu0 0.0
    %1272 = vmatpush2.xpose.msra.mxu0 0.0
    %1273 = vmatprep.subr.mxu0 0.0
    %1274 = vmatpush2.xpose.msra.mxu0 0.0
    %1275 = vmatprep.subr.mxu0 0.0
    %1276 = vmatpush2.xpose.msra.mxu0 0.0
    %1277 = vmatprep.subr.mxu0 0.0
    %1278 = vmatpush2.xpose.msra.mxu0 0.0
    %1279 = vmatprep.subr.mxu0 0.0
    %1280 = vmatpush2.xpose.msra.mxu0 0.0
    %1281 = vmatprep.subr.mxu0 0.0
    %1282 = vmatpush2.xpose.msra.mxu0 0.0
    %1283 = vmatprep.mubr.f32.mxu0 0.0
    %1284 = vmatmul.mubr.f32.gmra.mxu0 %v1211
    %v1285 = vpop.f32.mrf.mxu0
    %v1286 = vadd.f32 %v1202, %v1285
    %v1287 = vpop.f32.mrf.mxu0
    %1288 = vmatprep.mubr.f32.mxu0 0.0
    %1289 = vmatmul.mubr.f32.gmra.mxu0 %v1214
    %v1290 = vpop.f32.mrf.mxu0
    %v1291 = vadd.f32 %v1207, %v1290
    %v1292 = vpop.f32.mrf.mxu0
    %1293 = vdwg.mxu0
    %v1294 = vmax.f32 %v1286, 0.0
    %v1295 = vmax.f32 %v1291, 0.0
    %v1296 = vld [vmem:[%s7] sm:$0xff]
    %v1297 = vld [vmem:[%s7 + $0x8] sm:$0x3]
    %1299 = vset.pattern.permute.xlu0 0
    %1300 = vperm.xlu0 %1299, %v1296
    %v1301 = vpop.permute.xlu0 %1300
    %1304 = vset.pattern.permute.xlu0 0
    %1305 = vperm.xlu0 %1304, %v1297
    %v1306 = vpop.permute.xlu0 %1305
    %v1308 = vmul.f32 %v1294, %v1301
    %v1309 = vmul.f32 %v1295, %v1306
    %vm1310 = vcmask 15360
    %v1311 = vsel %vm1310, %v1308, 0.0
    %vm1312 = vcmask 9216
    %v1313 = vsel %vm1312, %v1309, 0.0
    %v1314 = vadd.f32 %v1311, %v1313
    %v1315 = vrot.slane %v1314, 4
    %v1316 = vadd.f32 %v1314, %v1315
    %v1317 = vrot.slane %v1316, 2
    %v1318 = vadd.f32 %v1316, %v1317
    %v1319 = vrot.slane %v1318, 1
    %v1320 = vadd.f32 %v1318, %v1319
    %v1321 = vld [vmem:[#allocation2] sm:$0x1]
    %1323 = vset.pattern.permute.xlu0 0
    %1324 = vperm.xlu0 %1323, %v1321
    %v1325 = vpop.permute.xlu0 %1324
    %v1327 = vlaneseq
    %v1328 = vshrl.u32 %v1327, 7
    %v1329 = vsub.s32 0, %v1328
    %v1330 = vrot.slane %v1325, %v1329
    %v1331 = vadd.f32 %v1320, %v1330
    %vm1332 = vcmask 8192
    %1333 = vst.msk [vmem:[#allocation6] sm:$0x1] %vm1332, %v1331
    // Predicated region
    $region42: #{vector_net_forward.1} parent=1 // pred_check
      _
    $region43: #{vector_net_forward.1} parent=1 // pred_check_branch
      %1335 = sbr.rel (0) target = $region45
    $region44: #{vector_net_forward.1} parent=1 // pred_region
      %s1337 = ssub.s32 16, 16
      %1338 = vsyncadd [#allocation5], %s1337
      %s1340 = sshll.u32 [#allocation6], 4
      %s1341 = int_to_ptr.vmem [resolvable:$true] %s1340
      %1343 = dma.vmem_to_hbm [thread:$0]  %s1341, 16, %s9, [#allocation5]
    $region45: #{vector_net_forward.1} parent=1 // pred_fallthru
      _
    // Predicated region
    $region46: #{vector_net_forward.1} parent=1 // pred_check
      _
    $region47: #{vector_net_forward.1} parent=1 // pred_check_branch
      %1345 = sbr.rel (0) target = $region49
    $region48: #{vector_net_forward.1} parent=1 // pred_region
      %1346 = dma.done [#allocation5], 16
    $region49: #{vector_net_forward.1} parent=1 // pred_fallthru
      _
    %1347 = vsyncpa [#allocation4], 1
    %1348 = vsyncpa [#allocation5], 1

</llo_original>
